<compile_context>
chip_gen: v6e
topology: v6e:2x2x1
jax: 0.10.0
libtpu: 0.0.40
codegen_flags: <defaults>
</compile_context>

<pallas_src>
import numpy as np
import jax
import jax.numpy as jnp
from jax.experimental import pallas as pl
from jax.experimental.pallas import tpu as pltpu

L1_LAMBDA_C2 = 1e-4
MSE_LAMBDA = 1.0

_NUM_CORES = 2   # leading "parallel" grid axis (v7x megacore split); harmless elsewhere
_LANES = 128


def _sublane_multiple(dtype):
    return 8 if jnp.dtype(dtype).itemsize == 4 else 16


def _to_slab(x, cap_rows):
    """Flatten an array into a lane-dense (rows, 128) slab in its native
    floating dtype (f32/bf16 kept, otherwise upcast to f32).  Rows are a
    multiple of the dtype's sublane granularity; zero padding is added only
    when the element count is ragged.  Returns (slab, tile_rows, n_tiles)."""
    x = jnp.asarray(x)
    if x.dtype not in (jnp.dtype(jnp.float32), jnp.dtype(jnp.bfloat16)):
        x = x.astype(jnp.float32)
    sub = _sublane_multiple(x.dtype)
    cap = max(sub, (int(cap_rows) // sub) * sub)

    flat = x.reshape(-1)
    n = int(flat.shape[0])
    rows = -(-n // _LANES)                      # rows needed to hold the data
    rows = max(sub, -(-rows // sub) * sub)      # sublane granularity
    if rows <= cap:
        tile_rows = rows                        # single block == full array (always legal)
    else:
        tile_rows = cap
        rows = -(-rows // cap) * cap            # no partial edge blocks
    pad = rows * _LANES - n
    if pad:
        flat = jnp.pad(flat, (0, pad))          # zeros: no effect on any sum
    slab = flat.reshape(rows, _LANES)
    return slab, tile_rows, rows // tile_rows


def _clamped_index_map(n_tiles, steps_per_core):
    def index_map(c, s):
        t = c * steps_per_core + s
        return (jnp.minimum(t, n_tiles - 1), 0)
    return index_map


def _partial_8x128(x_f32):
    # (tile_rows, 128) f32 -> (8, 128): vreg-wise adds only (VPU, no XLU).
    return jnp.sum(x_f32.reshape(-1, 8, _LANES), axis=0)


def _make_kernel(n_out_tiles, n_c2_tiles, prm_n_tiles, inv_n_out, steps_per_core):
    n_prm = len(prm_n_tiles)

    def kernel(*args):
        out_ref, tgt_ref, c2_ref = args[0], args[1], args[2]
        prm_refs = args[3:3 + n_prm]
        loss_ref = args[3 + n_prm]
        acc_mse, acc_c2, acc_prm = args[4 + n_prm], args[5 + n_prm], args[6 + n_prm]

        s = pl.program_id(1)
        t = pl.program_id(0) * steps_per_core + s

        @pl.when(s == 0)
        def _init():
            acc_mse[...] = jnp.zeros_like(acc_mse)
            acc_c2[...] = jnp.zeros_like(acc_c2)
            acc_prm[...] = jnp.zeros_like(acc_prm)

        @pl.when(t < n_out_tiles)
        def _mse():
            d = out_ref[...].astype(jnp.float32) - tgt_ref[...].astype(jnp.float32)
            acc_mse[...] += _partial_8x128(d * d)

        @pl.when(t < n_c2_tiles)
        def _c2():
            acc_c2[...] += _partial_8x128(jnp.abs(c2_ref[...].astype(jnp.float32)))

        for p_idx in range(n_prm):
            @pl.when(t < prm_n_tiles[p_idx])
            def _prm(ref=prm_refs[p_idx]):
                acc_prm[...] += _partial_8x128(jnp.abs(ref[...].astype(jnp.float32)))

        @pl.when(s == steps_per_core - 1)
        def _finalize():
            # Cross-lane reduce + all scaling happen exactly once per core.
            total = (jnp.sum(acc_mse[...]) * inv_n_out
                     + L1_LAMBDA_C2 * jnp.sum(acc_c2[...])
                     + MSE_LAMBDA * jnp.sum(acc_prm[...]))
            # Lane-dense, unmasked (8,128) store of this core's partial.
            loss_ref[...] = jnp.full((8, _LANES), total, dtype=jnp.float32)

    return kernel


def custom_loss2(outputs, targets, model_params, c2, *, tile_rows=512):
    """Pallas implementation of CustomLoss2.forward.  Returns a scalar f32."""
    if outputs.shape != targets.shape:
        raise ValueError("outputs and targets must have the same shape")
    if outputs.dtype != targets.dtype:
        common = jnp.promote_types(outputs.dtype, targets.dtype)
        outputs = outputs.astype(common)
        targets = targets.astype(common)

    n_out = int(np.prod(outputs.shape))
    model_params = [p for p in model_params if int(np.prod(jnp.shape(p))) > 0]
    n_prm = len(model_params)

    # Cap per-parameter tiles so (#params x 2 buffers x tile) stays well under
    # the scoped VMEM limit even for models with many parameters.
    if n_prm:
        budget_rows = (8 * 1024 * 1024) // (2 * n_prm * _LANES * 4)
        prm_cap = int(max(16, min(tile_rows, budget_rows)))
    else:
        prm_cap = tile_rows

    out_slab, out_tr, out_nt = _to_slab(outputs, tile_rows)
    tgt_slab, tgt_tr, tgt_nt = _to_slab(targets, tile_rows)
    c2_slab, c2_tr, c2_nt = _to_slab(c2, tile_rows)
    prm = [_to_slab(p, prm_cap) for p in model_params]

    max_tiles = max([out_nt, c2_nt] + [nt for (_, _, nt) in prm])
    steps_per_core = -(-max_tiles // _NUM_CORES)

    kernel = _make_kernel(out_nt, c2_nt, tuple(nt for (_, _, nt) in prm),
                          1.0 / n_out, steps_per_core)

    in_specs = [
        pl.BlockSpec((out_tr, _LANES), _clamped_index_map(out_nt, steps_per_core)),
        pl.BlockSpec((tgt_tr, _LANES), _clamped_index_map(tgt_nt, steps_per_core)),
        pl.BlockSpec((c2_tr, _LANES), _clamped_index_map(c2_nt, steps_per_core)),
    ] + [
        pl.BlockSpec((tr, _LANES), _clamped_index_map(nt, steps_per_core))
        for (_, tr, nt) in prm
    ]
    inputs = [out_slab, tgt_slab, c2_slab] + [slab for (slab, _, _) in prm]

    n_l1 = int(np.prod(c2.shape)) + sum(int(np.prod(jnp.shape(p))) for p in model_params)
    bytes_accessed = sum(int(np.prod(a.shape)) * a.dtype.itemsize for a in inputs)
    bytes_accessed += _NUM_CORES * 8 * _LANES * 4
    cost = pl.CostEstimate(flops=3 * n_out + 2 * n_l1, transcendentals=0,
                           bytes_accessed=bytes_accessed)

    partials = pl.pallas_call(
        kernel,
        out_shape=jax.ShapeDtypeStruct((_NUM_CORES * 8, _LANES), jnp.float32),
        grid=(_NUM_CORES, steps_per_core),
        in_specs=in_specs,
        out_specs=pl.BlockSpec((8, _LANES), lambda c, s: (c, 0)),
        scratch_shapes=[pltpu.VMEM((8, _LANES), jnp.float32) for _ in range(3)],
        compiler_params=pltpu.CompilerParams(
            dimension_semantics=("parallel", "arbitrary"),
            vmem_limit_bytes=32 * 1024 * 1024,
        ),
        cost_estimate=cost,
    )(*inputs)

    # One partial per (potential) TensorCore; everything is linear so they add.
    return partials[0, 0] + partials[8, 0]


if __name__ == "__main__":
    key = jax.random.PRNGKey(0)
    k_out, k_tgt, k_c2, k_w1, k_b1, k_w2, k_b2 = jax.random.split(key, 7)

    # outputs / targets: NCHW, small shapes
    outputs = jax.random.normal(k_out, (2, 4, 16, 16), dtype=jnp.float32)
    targets = jax.random.normal(k_tgt, (2, 4, 16, 16), dtype=jnp.float32)

    # C2: a small matrix
    c2 = jax.random.normal(k_c2, (16, 16), dtype=jnp.float32)

    # Synthetic "model" parameters (deterministic): two linear layers.
    model_params = [
        jax.random.normal(k_w1, (32, 16), dtype=jnp.float32) * 0.1,  # W1
        jax.random.normal(k_b1, (32,), dtype=jnp.float32) * 0.1,     # b1
        jax.random.normal(k_w2, (16, 32), dtype=jnp.float32) * 0.1,  # W2
        jax.random.normal(k_b2, (16,), dtype=jnp.float32) * 0.1,     # b2
    ]

    # Small tile_rows so the test actually exercises the multi-tile /
    # dual-core grid path (outputs become 2 row tiles, one per grid core).
    loss = custom_loss2(outputs, targets, model_params, c2, tile_rows=8)
    loss = jax.block_until_ready(loss)

    # Reference (plain JAX) check of the exact PyTorch semantics.
    mse_ref = jnp.mean((outputs - targets) ** 2)
    l1_c2_ref = L1_LAMBDA_C2 * jnp.sum(jnp.abs(c2))
    l1_model_ref = sum(jnp.sum(jnp.abs(p)) for p in model_params)
    total_ref = mse_ref + l1_c2_ref + MSE_LAMBDA * l1_model_ref

    np.testing.assert_allclose(np.asarray(loss), np.asarray(total_ref),
                               rtol=1e-5, atol=1e-5)
    print("KERNEL_OK")
</pallas_src>

<mosaic_0001>
module attributes {stable_mosaic.version = 11 : i64} {
  func.func @kernel(%arg0: i32, %arg1: i32, %arg2: memref<8x128xf32, #tpu.memory_space<vmem>>, %arg3: memref<8x128xf32, #tpu.memory_space<vmem>>, %arg4: memref<8x128xf32, #tpu.memory_space<vmem>>, %arg5: memref<8x128xf32, #tpu.memory_space<vmem>>, %arg6: memref<8x128xf32, #tpu.memory_space<vmem>>, %arg7: memref<8x128xf32, #tpu.memory_space<vmem>>, %arg8: memref<8x128xf32, #tpu.memory_space<vmem>>, %arg9: memref<8x128xf32, #tpu.memory_space<vmem>>, %arg10: memref<8x128xf32, #tpu.memory_space<vmem>>, %arg11: memref<8x128xf32, #tpu.memory_space<vmem>>, %arg12: memref<8x128xf32, #tpu.memory_space<vmem>>) attributes {dimension_semantics = [#tpu.dimension_semantics<parallel>, #tpu.dimension_semantics<arbitrary>], iteration_bounds = array<i64: 2, 1>, scalar_prefetch = 0 : i64, scratch_operands = 3 : i64, tpu.core_type = #tpu.core_type<tc>, window_params = [{transform_indices = @transform_0, window_bounds = array<i64: 8, 128>}, {transform_indices = @transform_1, window_bounds = array<i64: 8, 128>}, {transform_indices = @transform_2, window_bounds = array<i64: 8, 128>}, {transform_indices = @transform_3, window_bounds = array<i64: 8, 128>}, {transform_indices = @transform_4, window_bounds = array<i64: 8, 128>}, {transform_indices = @transform_5, window_bounds = array<i64: 8, 128>}, {transform_indices = @transform_6, window_bounds = array<i64: 8, 128>}, {transform_indices = @transform_7, window_bounds = array<i64: 8, 128>}]} {
    %c1_i32 = arith.constant 1 : i32
    %0 = arith.muli %arg0, %c1_i32 : i32
    %1 = arith.addi %0, %arg1 : i32
    %c0_i32 = arith.constant 0 : i32
    %2 = arith.cmpi eq, %arg1, %c0_i32 : i32
    %3 = arith.extui %2 : i1 to i32
    %c0_i32_0 = arith.constant 0 : i32
    %4 = arith.cmpi ne, %3, %c0_i32_0 : i32
    scf.if %4 {
      %cst = arith.constant 0.000000e+00 : f32
      %26 = vector.broadcast %cst : f32 to vector<8x128xf32>
      %c0 = arith.constant 0 : index
      %c0_14 = arith.constant 0 : index
      %27 = vector.load %arg10[%c0, %c0_14] : memref<8x128xf32, #tpu.memory_space<vmem>>, vector<8x128xf32>
      tpu.vector_store %arg10[%c0, %c0_14], %26 {strides = array<i32>} : memref<8x128xf32, #tpu.memory_space<vmem>>, vector<8x128xf32>,
      %cst_15 = arith.constant 0.000000e+00 : f32
      %28 = vector.broadcast %cst_15 : f32 to vector<8x128xf32>
      %c0_16 = arith.constant 0 : index
      %c0_17 = arith.constant 0 : index
      %29 = vector.load %arg11[%c0_16, %c0_17] : memref<8x128xf32, #tpu.memory_space<vmem>>, vector<8x128xf32>
      tpu.vector_store %arg11[%c0_16, %c0_17], %28 {strides = array<i32>} : memref<8x128xf32, #tpu.memory_space<vmem>>, vector<8x128xf32>,
      %cst_18 = arith.constant 0.000000e+00 : f32
      %30 = vector.broadcast %cst_18 : f32 to vector<8x128xf32>
      %c0_19 = arith.constant 0 : index
      %c0_20 = arith.constant 0 : index
      %31 = vector.load %arg12[%c0_19, %c0_20] : memref<8x128xf32, #tpu.memory_space<vmem>>, vector<8x128xf32>
      tpu.vector_store %arg12[%c0_19, %c0_20], %30 {strides = array<i32>} : memref<8x128xf32, #tpu.memory_space<vmem>>, vector<8x128xf32>,
    } else {
    }
    %c2_i32 = arith.constant 2 : i32
    %5 = arith.cmpi slt, %1, %c2_i32 : i32
    %6 = arith.extui %5 : i1 to i32
    %c0_i32_1 = arith.constant 0 : i32
    %7 = arith.cmpi ne, %6, %c0_i32_1 : i32
    scf.if %7 {
      %c0 = arith.constant 0 : index
      %c0_14 = arith.constant 0 : index
      %26 = vector.load %arg2[%c0, %c0_14] : memref<8x128xf32, #tpu.memory_space<vmem>>, vector<8x128xf32>
      %c0_15 = arith.constant 0 : index
      %c0_16 = arith.constant 0 : index
      %27 = vector.load %arg3[%c0_15, %c0_16] : memref<8x128xf32, #tpu.memory_space<vmem>>, vector<8x128xf32>
      %28 = arith.subf %26, %27 : vector<8x128xf32>
      %c0_17 = arith.constant 0 : index
      %c0_18 = arith.constant 0 : index
      %29 = vector.load %arg10[%c0_17, %c0_18] : memref<8x128xf32, #tpu.memory_space<vmem>>, vector<8x128xf32>
      %30 = arith.mulf %28, %28 : vector<8x128xf32>
      %31 = vector.shape_cast %30 : vector<8x128xf32> to vector<1x8x128xf32>
      %cst = arith.constant dense<0.000000e+00> : vector<8x128xf32>
      %32 = vector.multi_reduction <add>, %31, %cst [0] : vector<1x8x128xf32> to vector<8x128xf32>
      %33 = arith.addf %29, %32 : vector<8x128xf32>
      %c0_19 = arith.constant 0 : index
      %c0_20 = arith.constant 0 : index
      %34 = vector.load %arg10[%c0_19, %c0_20] : memref<8x128xf32, #tpu.memory_space<vmem>>, vector<8x128xf32>
      tpu.vector_store %arg10[%c0_19, %c0_20], %33 {strides = array<i32>} : memref<8x128xf32, #tpu.memory_space<vmem>>, vector<8x128xf32>,
    } else {
    }
    %c1_i32_2 = arith.constant 1 : i32
    %8 = arith.cmpi slt, %1, %c1_i32_2 : i32
    %9 = arith.extui %8 : i1 to i32
    %c0_i32_3 = arith.constant 0 : i32
    %10 = arith.cmpi ne, %9, %c0_i32_3 : i32
    scf.if %10 {
      %c0 = arith.constant 0 : index
      %c0_14 = arith.constant 0 : index
      %26 = vector.load %arg11[%c0, %c0_14] : memref<8x128xf32, #tpu.memory_space<vmem>>, vector<8x128xf32>
      %c0_15 = arith.constant 0 : index
      %c0_16 = arith.constant 0 : index
      %27 = vector.load %arg4[%c0_15, %c0_16] : memref<8x128xf32, #tpu.memory_space<vmem>>, vector<8x128xf32>
      %28 = math.absf %27 : vector<8x128xf32>
      %29 = vector.shape_cast %28 : vector<8x128xf32> to vector<1x8x128xf32>
      %cst = arith.constant dense<0.000000e+00> : vector<8x128xf32>
      %30 = vector.multi_reduction <add>, %29, %cst [0] : vector<1x8x128xf32> to vector<8x128xf32>
      %31 = arith.addf %26, %30 : vector<8x128xf32>
      %c0_17 = arith.constant 0 : index
      %c0_18 = arith.constant 0 : index
      %32 = vector.load %arg11[%c0_17, %c0_18] : memref<8x128xf32, #tpu.memory_space<vmem>>, vector<8x128xf32>
      tpu.vector_store %arg11[%c0_17, %c0_18], %31 {strides = array<i32>} : memref<8x128xf32, #tpu.memory_space<vmem>>, vector<8x128xf32>,
    } else {
    }
    %c1_i32_4 = arith.constant 1 : i32
    %11 = arith.cmpi slt, %1, %c1_i32_4 : i32
    %12 = arith.extui %11 : i1 to i32
    %c0_i32_5 = arith.constant 0 : i32
    %13 = arith.cmpi ne, %12, %c0_i32_5 : i32
    scf.if %13 {
      %c0 = arith.constant 0 : index
      %c0_14 = arith.constant 0 : index
      %26 = vector.load %arg12[%c0, %c0_14] : memref<8x128xf32, #tpu.memory_space<vmem>>, vector<8x128xf32>
      %c0_15 = arith.constant 0 : index
      %c0_16 = arith.constant 0 : index
      %27 = vector.load %arg5[%c0_15, %c0_16] : memref<8x128xf32, #tpu.memory_space<vmem>>, vector<8x128xf32>
      %28 = math.absf %27 : vector<8x128xf32>
      %29 = vector.shape_cast %28 : vector<8x128xf32> to vector<1x8x128xf32>
      %cst = arith.constant dense<0.000000e+00> : vector<8x128xf32>
      %30 = vector.multi_reduction <add>, %29, %cst [0] : vector<1x8x128xf32> to vector<8x128xf32>
      %31 = arith.addf %26, %30 : vector<8x128xf32>
      %c0_17 = arith.constant 0 : index
      %c0_18 = arith.constant 0 : index
      %32 = vector.load %arg12[%c0_17, %c0_18] : memref<8x128xf32, #tpu.memory_space<vmem>>, vector<8x128xf32>
      tpu.vector_store %arg12[%c0_17, %c0_18], %31 {strides = array<i32>} : memref<8x128xf32, #tpu.memory_space<vmem>>, vector<8x128xf32>,
    } else {
    }
    %c1_i32_6 = arith.constant 1 : i32
    %14 = arith.cmpi slt, %1, %c1_i32_6 : i32
    %15 = arith.extui %14 : i1 to i32
    %c0_i32_7 = arith.constant 0 : i32
    %16 = arith.cmpi ne, %15, %c0_i32_7 : i32
    scf.if %16 {
      %c0 = arith.constant 0 : index
      %c0_14 = arith.constant 0 : index
      %26 = vector.load %arg12[%c0, %c0_14] : memref<8x128xf32, #tpu.memory_space<vmem>>, vector<8x128xf32>
      %c0_15 = arith.constant 0 : index
      %c0_16 = arith.constant 0 : index
      %27 = vector.load %arg6[%c0_15, %c0_16] : memref<8x128xf32, #tpu.memory_space<vmem>>, vector<8x128xf32>
      %28 = math.absf %27 : vector<8x128xf32>
      %29 = vector.shape_cast %28 : vector<8x128xf32> to vector<1x8x128xf32>
      %cst = arith.constant dense<0.000000e+00> : vector<8x128xf32>
      %30 = vector.multi_reduction <add>, %29, %cst [0] : vector<1x8x128xf32> to vector<8x128xf32>
      %31 = arith.addf %26, %30 : vector<8x128xf32>
      %c0_17 = arith.constant 0 : index
      %c0_18 = arith.constant 0 : index
      %32 = vector.load %arg12[%c0_17, %c0_18] : memref<8x128xf32, #tpu.memory_space<vmem>>, vector<8x128xf32>
      tpu.vector_store %arg12[%c0_17, %c0_18], %31 {strides = array<i32>} : memref<8x128xf32, #tpu.memory_space<vmem>>, vector<8x128xf32>,
    } else {
    }
    %c1_i32_8 = arith.constant 1 : i32
    %17 = arith.cmpi slt, %1, %c1_i32_8 : i32
    %18 = arith.extui %17 : i1 to i32
    %c0_i32_9 = arith.constant 0 : i32
    %19 = arith.cmpi ne, %18, %c0_i32_9 : i32
    scf.if %19 {
      %c0 = arith.constant 0 : index
      %c0_14 = arith.constant 0 : index
      %26 = vector.load %arg12[%c0, %c0_14] : memref<8x128xf32, #tpu.memory_space<vmem>>, vector<8x128xf32>
      %c0_15 = arith.constant 0 : index
      %c0_16 = arith.constant 0 : index
      %27 = vector.load %arg7[%c0_15, %c0_16] : memref<8x128xf32, #tpu.memory_space<vmem>>, vector<8x128xf32>
      %28 = math.absf %27 : vector<8x128xf32>
      %29 = vector.shape_cast %28 : vector<8x128xf32> to vector<1x8x128xf32>
      %cst = arith.constant dense<0.000000e+00> : vector<8x128xf32>
      %30 = vector.multi_reduction <add>, %29, %cst [0] : vector<1x8x128xf32> to vector<8x128xf32>
      %31 = arith.addf %26, %30 : vector<8x128xf32>
      %c0_17 = arith.constant 0 : index
      %c0_18 = arith.constant 0 : index
      %32 = vector.load %arg12[%c0_17, %c0_18] : memref<8x128xf32, #tpu.memory_space<vmem>>, vector<8x128xf32>
      tpu.vector_store %arg12[%c0_17, %c0_18], %31 {strides = array<i32>} : memref<8x128xf32, #tpu.memory_space<vmem>>, vector<8x128xf32>,
    } else {
    }
    %c1_i32_10 = arith.constant 1 : i32
    %20 = arith.cmpi slt, %1, %c1_i32_10 : i32
    %21 = arith.extui %20 : i1 to i32
    %c0_i32_11 = arith.constant 0 : i32
    %22 = arith.cmpi ne, %21, %c0_i32_11 : i32
    scf.if %22 {
      %c0 = arith.constant 0 : index
      %c0_14 = arith.constant 0 : index
      %26 = vector.load %arg12[%c0, %c0_14] : memref<8x128xf32, #tpu.memory_space<vmem>>, vector<8x128xf32>
      %c0_15 = arith.constant 0 : index
      %c0_16 = arith.constant 0 : index
      %27 = vector.load %arg8[%c0_15, %c0_16] : memref<8x128xf32, #tpu.memory_space<vmem>>, vector<8x128xf32>
      %28 = math.absf %27 : vector<8x128xf32>
      %29 = vector.shape_cast %28 : vector<8x128xf32> to vector<1x8x128xf32>
      %cst = arith.constant dense<0.000000e+00> : vector<8x128xf32>
      %30 = vector.multi_reduction <add>, %29, %cst [0] : vector<1x8x128xf32> to vector<8x128xf32>
      %31 = arith.addf %26, %30 : vector<8x128xf32>
      %c0_17 = arith.constant 0 : index
      %c0_18 = arith.constant 0 : index
      %32 = vector.load %arg12[%c0_17, %c0_18] : memref<8x128xf32, #tpu.memory_space<vmem>>, vector<8x128xf32>
      tpu.vector_store %arg12[%c0_17, %c0_18], %31 {strides = array<i32>} : memref<8x128xf32, #tpu.memory_space<vmem>>, vector<8x128xf32>,
    } else {
    }
    %c0_i32_12 = arith.constant 0 : i32
    %23 = arith.cmpi eq, %arg1, %c0_i32_12 : i32
    %24 = arith.extui %23 : i1 to i32
    %c0_i32_13 = arith.constant 0 : i32
    %25 = arith.cmpi ne, %24, %c0_i32_13 : i32
    scf.if %25 {
      %c0 = arith.constant 0 : index
      %c0_14 = arith.constant 0 : index
      %26 = vector.load %arg10[%c0, %c0_14] : memref<8x128xf32, #tpu.memory_space<vmem>>, vector<8x128xf32>
      %27 = vector.shape_cast %26 : vector<8x128xf32> to vector<1x8x128xf32>
      %cst = arith.constant dense<0.000000e+00> : vector<1xf32>
      %28 = vector.multi_reduction <add>, %27, %cst [1, 2] : vector<1x8x128xf32> to vector<1xf32>
      %29 = vector.shape_cast %28 : vector<1xf32> to vector<1x1x1xf32>
      %30 = vector.extract %29[0, 0, 0] : f32 from vector<1x1x1xf32>
      %cst_15 = arith.constant 4.8828125E-4 : f32
      %31 = arith.mulf %30, %cst_15 : f32
      %c0_16 = arith.constant 0 : index
      %c0_17 = arith.constant 0 : index
      %32 = vector.load %arg11[%c0_16, %c0_17] : memref<8x128xf32, #tpu.memory_space<vmem>>, vector<8x128xf32>
      %33 = vector.shape_cast %32 : vector<8x128xf32> to vector<1x8x128xf32>
      %cst_18 = arith.constant dense<0.000000e+00> : vector<1xf32>
      %34 = vector.multi_reduction <add>, %33, %cst_18 [1, 2] : vector<1x8x128xf32> to vector<1xf32>
      %35 = vector.shape_cast %34 : vector<1xf32> to vector<1x1x1xf32>
      %36 = vector.extract %35[0, 0, 0] : f32 from vector<1x1x1xf32>
      %cst_19 = arith.constant 9.99999974E-5 : f32
      %37 = arith.mulf %cst_19, %36 : f32
      %38 = arith.addf %31, %37 : f32
      %c0_20 = arith.constant 0 : index
      %c0_21 = arith.constant 0 : index
      %39 = vector.load %arg12[%c0_20, %c0_21] : memref<8x128xf32, #tpu.memory_space<vmem>>, vector<8x128xf32>
      %40 = vector.shape_cast %39 : vector<8x128xf32> to vector<1x8x128xf32>
      %cst_22 = arith.constant dense<0.000000e+00> : vector<1xf32>
      %41 = vector.multi_reduction <add>, %40, %cst_22 [1, 2] : vector<1x8x128xf32> to vector<1xf32>
      %42 = vector.shape_cast %41 : vector<1xf32> to vector<1x1x1xf32>
      %43 = vector.extract %42[0, 0, 0] : f32 from vector<1x1x1xf32>
      %cst_23 = arith.constant 1.000000e+00 : f32
      %44 = arith.mulf %cst_23, %43 : f32
      %45 = arith.addf %38, %44 : f32
      %46 = vector.broadcast %45 : f32 to vector<8x128xf32>
      %c0_24 = arith.constant 0 : index
      %c0_25 = arith.constant 0 : index
      %47 = vector.load %arg9[%c0_24, %c0_25] : memref<8x128xf32, #tpu.memory_space<vmem>>, vector<8x128xf32>
      tpu.vector_store %arg9[%c0_24, %c0_25], %46 {strides = array<i32>} : memref<8x128xf32, #tpu.memory_space<vmem>>, vector<8x128xf32>,
    } else {
    }
    return
  }
  func.func @transform_0(%arg0: i32, %arg1: i32) -> (i32, i32) {
    %c1_i32 = arith.constant 1 : i32
    %0 = arith.muli %arg0, %c1_i32 : i32
    %1 = arith.addi %0, %arg1 : i32
    %c1_i32_0 = arith.constant 1 : i32
    %2 = arith.minsi %1, %c1_i32_0 : i32
    %c0_i32 = arith.constant 0 : i32
    %c0_i32_1 = arith.constant 0 : i32
    return %2, %c0_i32 : i32, i32
  }
  func.func @transform_1(%arg0: i32, %arg1: i32) -> (i32, i32) {
    %c1_i32 = arith.constant 1 : i32
    %0 = arith.muli %arg0, %c1_i32 : i32
    %1 = arith.addi %0, %arg1 : i32
    %c1_i32_0 = arith.constant 1 : i32
    %2 = arith.minsi %1, %c1_i32_0 : i32
    %c0_i32 = arith.constant 0 : i32
    %c0_i32_1 = arith.constant 0 : i32
    return %2, %c0_i32 : i32, i32
  }
  func.func @transform_2(%arg0: i32, %arg1: i32) -> (i32, i32) {
    %c1_i32 = arith.constant 1 : i32
    %0 = arith.muli %arg0, %c1_i32 : i32
    %1 = arith.addi %0, %arg1 : i32
    %c0_i32 = arith.constant 0 : i32
    %2 = arith.minsi %1, %c0_i32 : i32
    %c0_i32_0 = arith.constant 0 : i32
    %c0_i32_1 = arith.constant 0 : i32
    return %2, %c0_i32_0 : i32, i32
  }
  func.func @transform_3(%arg0: i32, %arg1: i32) -> (i32, i32) {
    %c1_i32 = arith.constant 1 : i32
    %0 = arith.muli %arg0, %c1_i32 : i32
    %1 = arith.addi %0, %arg1 : i32
    %c0_i32 = arith.constant 0 : i32
    %2 = arith.minsi %1, %c0_i32 : i32
    %c0_i32_0 = arith.constant 0 : i32
    %c0_i32_1 = arith.constant 0 : i32
    return %2, %c0_i32_0 : i32, i32
  }
  func.func @transform_4(%arg0: i32, %arg1: i32) -> (i32, i32) {
    %c1_i32 = arith.constant 1 : i32
    %0 = arith.muli %arg0, %c1_i32 : i32
    %1 = arith.addi %0, %arg1 : i32
    %c0_i32 = arith.constant 0 : i32
    %2 = arith.minsi %1, %c0_i32 : i32
    %c0_i32_0 = arith.constant 0 : i32
    %c0_i32_1 = arith.constant 0 : i32
    return %2, %c0_i32_0 : i32, i32
  }
  func.func @transform_5(%arg0: i32, %arg1: i32) -> (i32, i32) {
    %c1_i32 = arith.constant 1 : i32
    %0 = arith.muli %arg0, %c1_i32 : i32
    %1 = arith.addi %0, %arg1 : i32
    %c0_i32 = arith.constant 0 : i32
    %2 = arith.minsi %1, %c0_i32 : i32
    %c0_i32_0 = arith.constant 0 : i32
    %c0_i32_1 = arith.constant 0 : i32
    return %2, %c0_i32_0 : i32, i32
  }
  func.func @transform_6(%arg0: i32, %arg1: i32) -> (i32, i32) {
    %c1_i32 = arith.constant 1 : i32
    %0 = arith.muli %arg0, %c1_i32 : i32
    %1 = arith.addi %0, %arg1 : i32
    %c0_i32 = arith.constant 0 : i32
    %2 = arith.minsi %1, %c0_i32 : i32
    %c0_i32_0 = arith.constant 0 : i32
    %c0_i32_1 = arith.constant 0 : i32
    return %2, %c0_i32_0 : i32, i32
  }
  func.func @transform_7(%arg0: i32, %arg1: i32) -> (i32, i32) {
    %c0_i32 = arith.constant 0 : i32
    %c0_i32_0 = arith.constant 0 : i32
    return %arg0, %c0_i32 : i32, i32
  }
}

</mosaic_0001>

<llo_original>
// kernel: tpu_custom_call.1
$region0: #{tpu_custom_call.1}
  #allocation0 [shape = 'u32[]', space=smem, size = 0x4, offset = 0x4, fixed_abs, tag = 'smem constant byte address 0x4 - core index']
  #allocation1 [shape = 'u32[144,128]{1,0:T(1,128)}', space=vmem, size = 0x12000, scoped, tag = 'internal scratch']
  #allocation2 [shape = 'f32[8,128]{1,0:T(8,128)}', space=vmem, size = 0x1000, scoped, tag = 'scratch operand']
  #allocation3 [shape = 'f32[8,128]{1,0:T(8,128)}', space=vmem, size = 0x1000, scoped, tag = 'scratch operand']
  #allocation4 [shape = 'f32[8,128]{1,0:T(8,128)}', space=vmem, size = 0x1000, scoped, tag = 'scratch operand']
  %s0 = inlined_call_operand.hbm [shape: f32[16,128], index: 0, kind: input, shape index: {}]
  %s1 = inlined_call_operand.hbm [shape: f32[16,128], index: 1, kind: input, shape index: {}]
  %s2 = inlined_call_operand.hbm [shape: f32[8,128], index: 2, kind: input, shape index: {}]
  %s3 = inlined_call_operand.hbm [shape: f32[8,128], index: 3, kind: input, shape index: {}]
  %s4 = inlined_call_operand.hbm [shape: f32[8,128], index: 4, kind: input, shape index: {}]
  %s5 = inlined_call_operand.vmem [shape: f32[8,128], index: 5, kind: input, shape index: {}]
  %s6 = inlined_call_operand.hbm [shape: f32[8,128], index: 6, kind: input, shape index: {}]
  %s7 = inlined_call_operand.hbm [shape: f32[16,128], index: 7, kind: output, shape index: {}]
  %s8 = sld [smem:[#allocation0]]
  $region101: #{tpu_custom_call.1} parent=0
    _
  %s10 = ssub.s32 1, %s8
  %s11 = scalar_select 0, %s10, %s8
  $region1: #{tpu_custom_call.1} parent=0
    #allocation5 [shape = 'u8[8192]{0}', space=vmem, size = 0x2000, scoped, tag = 'input window, operand 0']
    #allocation6 [shape = 's32[2]{0}', space=sflag, size = 0x8, scoped, tag = 'scoped memory for tpu_custom_call.1']
    #allocation7 [shape = 's32[2]{0}', space=sflag, size = 0x8, scoped, tag = 'scoped memory for tpu_custom_call.1']
    #allocation8 [shape = 'u8[8192]{0}', space=vmem, size = 0x2000, scoped, tag = 'input window, operand 1']
    #allocation9 [shape = 's32[2]{0}', space=sflag, size = 0x8, scoped, tag = 'scoped memory for tpu_custom_call.1']
    #allocation10 [shape = 'u8[8192]{0}', space=vmem, size = 0x2000, scoped, tag = 'input window, operand 2']
    #allocation11 [shape = 'u8[8192]{0}', space=vmem, size = 0x2000, scoped, tag = 'input window, operand 3']
    #allocation12 [shape = 's32[2]{0}', space=sflag, size = 0x8, scoped, tag = 'scoped memory for tpu_custom_call.1']
    #allocation13 [shape = 'u8[8192]{0}', space=vmem, size = 0x2000, scoped, tag = 'input window, operand 4']
    #allocation14 [shape = 'u8[8192]{0}', space=vmem, size = 0x2000, scoped, tag = 'input window, operand 6']
    #allocation15 [shape = 's32[2]{0}', space=sflag, size = 0x8, scoped, tag = 'scoped memory for tpu_custom_call.1']
    #allocation16 [shape = 'u8[8192]{0}', space=vmem, size = 0x2000, scoped, tag = 'output window, operand 0']
    %12 = vsyncpa [#allocation6], 0
    %s13 = scalar_lea.sflag [#allocation6], 1
    %14 = vsyncpa %s13, 0
    %15 = vsyncpa [#allocation9], 0
    %s16 = scalar_lea.sflag [#allocation9], 1
    %17 = vsyncpa %s16, 0
    %18 = vsyncpa [#allocation12], 0
    %s19 = scalar_lea.sflag [#allocation12], 1
    %20 = vsyncpa %s19, 0
    %21 = vsyncpa [#allocation15], 0
    %s22 = scalar_lea.sflag [#allocation15], 1
    %23 = vsyncpa %s22, 0
    %24 = vsyncpa [#allocation7], 0
    %s25 = scalar_lea.sflag [#allocation7], 1
    %26 = vsyncpa %s25, 0
    loop: start=0, step=1, limit=4
    $region2: #{tpu_custom_call.1} parent=1 // loop_pre_header
      _
    $region3: #{tpu_custom_call.1} parent=1 // loop_header
      %s28 = sphi 0, %s32
      %p29 = scmp.ge.s32.totalorder %s28, 4
      %s35 = sphi 0, %s47
      %s36 = sphi 0, %s43
      %s37 = sphi 0, %s35
      %s38 = sphi 0, %s36
      %s39 = sphi 0, %s37
      %s40 = sphi 0, %s38
      %s56 = sphi 0, %s58
      %s59 = sphi 0, %s56
      %s60 = sphi 0, %s59
      %s76 = sphi 0, %s60
      %s88 = sphi 0, %s90
      %s91 = sphi 0, %s88
      %s92 = sphi 0, %s91
      %s108 = sphi 0, %s92
      %s120 = sphi 0, %s122
      %s123 = sphi 0, %s120
      %s124 = sphi 0, %s123
      %s140 = sphi 0, %s124
      %s152 = sphi 0, %s154
      %s155 = sphi 0, %s152
      %s156 = sphi 0, %s155
      %s172 = sphi 0, %s156
      %s184 = sphi 0, %s186
      %s187 = sphi 0, %s184
      %s188 = sphi 0, %s187
      %s204 = sphi 0, %s188
      %s216 = sphi 0, %s218
      %s219 = sphi 0, %s216
      %s220 = sphi 0, %s219
      %s236 = sphi 0, %s220
      %s248 = sphi 0, %s250
      %s251 = sphi 0, %s248
      %s252 = sphi 0, %s251
      %s268 = sphi 0, %s252
      %s274 = sphi 0, %s276
      %s277 = sphi 0, %s274
      %s278 = sphi 0, %s277
      %s294 = sphi 0, %s278
    $region4: #{tpu_custom_call.1} parent=1 // loop_header_branch
      %31 = sbr.rel (%p29) target = $region8
    $region5: #{tpu_custom_call.1} parent=1 // loop_body
      %s33 = ssub.s32 %s28, 1
      %s34 = ssub.s32 %s28, 2
      %s41 = sadd.s32 1, %s36
      %p42 = scmp.ge.s32.totalorder %s41, 1
      %s43 = scalar_select %p42, 0, %s41
      %s44 = sadd.s32 1, %s35
      %s45 = scalar_select %p42, %s44, %s35
      %p46 = scmp.ge.s32.totalorder %s45, 2
      %s47 = scalar_select %p46, 0, %s45
      %s48 = sadd.s32 %s35, %s36
      %p49 = scmp.lt.s32.totalorder %s48, 1
      %s50 = scalar_select %p49, %s48, 1
      %s51 = sadd.s32 %s47, %s43
      %p52 = scmp.lt.s32.totalorder %s51, 1
      %s53 = scalar_select %p52, %s51, 1
      %s54 = ssub.s32 %s50, %s53
      %p55 = scmp.eq.s32.totalorder %s54, 0
      %s57 = sadd.s32 %s56, 1
      %s58 = scalar_select %p55, %s56, %s57
      %p61 = pneg %p55
      %p62 = scmp.eq.s32.totalorder %s28, 1
      %p63 = por %p61, %p62
      %p64 = scmp.ne.s32.totalorder %s56, %s59
      %p65 = scmp.eq.s32.totalorder %s28, 0
      %p66 = por %p64, %p65
      %p67 = scmp.ne.s32.totalorder %s56, %s59
      %p68 = scmp.eq.s32.totalorder %s33, 1
      %p69 = por %p67, %p68
      %p70 = scmp.ne.s32.totalorder %s59, %s60
      %p71 = scmp.eq.s32.totalorder %s33, 0
      %p72 = por %p70, %p71
      %p73 = scmp.ne.s32.totalorder %s59, %s60
      %p74 = scmp.eq.s32.totalorder %s34, 1
      %p75 = por %p73, %p74
      %p77 = scmp.ne.s32.totalorder %s60, %s76
      %p78 = scmp.eq.s32.totalorder %s34, 0
      %p79 = por %p77, %p78
      %s80 = sadd.s32 %s35, %s36
      %p81 = scmp.lt.s32.totalorder %s80, 1
      %s82 = scalar_select %p81, %s80, 1
      %s83 = sadd.s32 %s47, %s43
      %p84 = scmp.lt.s32.totalorder %s83, 1
      %s85 = scalar_select %p84, %s83, 1
      %s86 = ssub.s32 %s82, %s85
      %p87 = scmp.eq.s32.totalorder %s86, 0
      %s89 = sadd.s32 %s88, 1
      %s90 = scalar_select %p87, %s88, %s89
      %p93 = pneg %p87
      %p94 = scmp.eq.s32.totalorder %s28, 1
      %p95 = por %p93, %p94
      %p96 = scmp.ne.s32.totalorder %s88, %s91
      %p97 = scmp.eq.s32.totalorder %s28, 0
      %p98 = por %p96, %p97
      %p99 = scmp.ne.s32.totalorder %s88, %s91
      %p100 = scmp.eq.s32.totalorder %s33, 1
      %p101 = por %p99, %p100
      %p102 = scmp.ne.s32.totalorder %s91, %s92
      %p103 = scmp.eq.s32.totalorder %s33, 0
      %p104 = por %p102, %p103
      %p105 = scmp.ne.s32.totalorder %s91, %s92
      %p106 = scmp.eq.s32.totalorder %s34, 1
      %p107 = por %p105, %p106
      %p109 = scmp.ne.s32.totalorder %s92, %s108
      %p110 = scmp.eq.s32.totalorder %s34, 0
      %p111 = por %p109, %p110
      %s112 = sadd.s32 %s35, %s36
      %p113 = scmp.lt.s32.totalorder %s112, 0
      %s114 = scalar_select %p113, %s112, 0
      %s115 = sadd.s32 %s47, %s43
      %p116 = scmp.lt.s32.totalorder %s115, 0
      %s117 = scalar_select %p116, %s115, 0
      %s118 = ssub.s32 %s114, %s117
      %p119 = scmp.eq.s32.totalorder %s118, 0
      %s121 = sadd.s32 %s120, 1
      %s122 = scalar_select %p119, %s120, %s121
      %p125 = pneg %p119
      %p126 = scmp.eq.s32.totalorder %s28, 1
      %p127 = por %p125, %p126
      %p128 = scmp.ne.s32.totalorder %s120, %s123
      %p129 = scmp.eq.s32.totalorder %s28, 0
      %p130 = por %p128, %p129
      %p131 = scmp.ne.s32.totalorder %s120, %s123
      %p132 = scmp.eq.s32.totalorder %s33, 1
      %p133 = por %p131, %p132
      %p134 = scmp.ne.s32.totalorder %s123, %s124
      %p135 = scmp.eq.s32.totalorder %s33, 0
      %p136 = por %p134, %p135
      %p137 = scmp.ne.s32.totalorder %s123, %s124
      %p138 = scmp.eq.s32.totalorder %s34, 1
      %p139 = por %p137, %p138
      %p141 = scmp.ne.s32.totalorder %s124, %s140
      %p142 = scmp.eq.s32.totalorder %s34, 0
      %p143 = por %p141, %p142
      %s144 = sadd.s32 %s35, %s36
      %p145 = scmp.lt.s32.totalorder %s144, 0
      %s146 = scalar_select %p145, %s144, 0
      %s147 = sadd.s32 %s47, %s43
      %p148 = scmp.lt.s32.totalorder %s147, 0
      %s149 = scalar_select %p148, %s147, 0
      %s150 = ssub.s32 %s146, %s149
      %p151 = scmp.eq.s32.totalorder %s150, 0
      %s153 = sadd.s32 %s152, 1
      %s154 = scalar_select %p151, %s152, %s153
      %p157 = pneg %p151
      %p158 = scmp.eq.s32.totalorder %s28, 1
      %p159 = por %p157, %p158
      %p160 = scmp.ne.s32.totalorder %s152, %s155
      %p161 = scmp.eq.s32.totalorder %s28, 0
      %p162 = por %p160, %p161
      %p163 = scmp.ne.s32.totalorder %s152, %s155
      %p164 = scmp.eq.s32.totalorder %s33, 1
      %p165 = por %p163, %p164
      %p166 = scmp.ne.s32.totalorder %s155, %s156
      %p167 = scmp.eq.s32.totalorder %s33, 0
      %p168 = por %p166, %p167
      %p169 = scmp.ne.s32.totalorder %s155, %s156
      %p170 = scmp.eq.s32.totalorder %s34, 1
      %p171 = por %p169, %p170
      %p173 = scmp.ne.s32.totalorder %s156, %s172
      %p174 = scmp.eq.s32.totalorder %s34, 0
      %p175 = por %p173, %p174
      %s176 = sadd.s32 %s35, %s36
      %p177 = scmp.lt.s32.totalorder %s176, 0
      %s178 = scalar_select %p177, %s176, 0
      %s179 = sadd.s32 %s47, %s43
      %p180 = scmp.lt.s32.totalorder %s179, 0
      %s181 = scalar_select %p180, %s179, 0
      %s182 = ssub.s32 %s178, %s181
      %p183 = scmp.eq.s32.totalorder %s182, 0
      %s185 = sadd.s32 %s184, 1
      %s186 = scalar_select %p183, %s184, %s185
      %p189 = pneg %p183
      %p190 = scmp.eq.s32.totalorder %s28, 1
      %p191 = por %p189, %p190
      %p192 = scmp.ne.s32.totalorder %s184, %s187
      %p193 = scmp.eq.s32.totalorder %s28, 0
      %p194 = por %p192, %p193
      %p195 = scmp.ne.s32.totalorder %s184, %s187
      %p196 = scmp.eq.s32.totalorder %s33, 1
      %p197 = por %p195, %p196
      %p198 = scmp.ne.s32.totalorder %s187, %s188
      %p199 = scmp.eq.s32.totalorder %s33, 0
      %p200 = por %p198, %p199
      %p201 = scmp.ne.s32.totalorder %s187, %s188
      %p202 = scmp.eq.s32.totalorder %s34, 1
      %p203 = por %p201, %p202
      %p205 = scmp.ne.s32.totalorder %s188, %s204
      %p206 = scmp.eq.s32.totalorder %s34, 0
      %p207 = por %p205, %p206
      %s208 = sadd.s32 %s35, %s36
      %p209 = scmp.lt.s32.totalorder %s208, 0
      %s210 = scalar_select %p209, %s208, 0
      %s211 = sadd.s32 %s47, %s43
      %p212 = scmp.lt.s32.totalorder %s211, 0
      %s213 = scalar_select %p212, %s211, 0
      %s214 = ssub.s32 %s210, %s213
      %p215 = scmp.eq.s32.totalorder %s214, 0
      %s217 = sadd.s32 %s216, 1
      %s218 = scalar_select %p215, %s216, %s217
      %p221 = pneg %p215
      %p222 = scmp.eq.s32.totalorder %s28, 1
      %p223 = por %p221, %p222
      %p224 = scmp.ne.s32.totalorder %s216, %s219
      %p225 = scmp.eq.s32.totalorder %s28, 0
      %p226 = por %p224, %p225
      %p227 = scmp.ne.s32.totalorder %s216, %s219
      %p228 = scmp.eq.s32.totalorder %s33, 1
      %p229 = por %p227, %p228
      %p230 = scmp.ne.s32.totalorder %s219, %s220
      %p231 = scmp.eq.s32.totalorder %s33, 0
      %p232 = por %p230, %p231
      %p233 = scmp.ne.s32.totalorder %s219, %s220
      %p234 = scmp.eq.s32.totalorder %s34, 1
      %p235 = por %p233, %p234
      %p237 = scmp.ne.s32.totalorder %s220, %s236
      %p238 = scmp.eq.s32.totalorder %s34, 0
      %p239 = por %p237, %p238
      %s240 = sadd.s32 %s35, %s36
      %p241 = scmp.lt.s32.totalorder %s240, 0
      %s242 = scalar_select %p241, %s240, 0
      %s243 = sadd.s32 %s47, %s43
      %p244 = scmp.lt.s32.totalorder %s243, 0
      %s245 = scalar_select %p244, %s243, 0
      %s246 = ssub.s32 %s242, %s245
      %p247 = scmp.eq.s32.totalorder %s246, 0
      %s249 = sadd.s32 %s248, 1
      %s250 = scalar_select %p247, %s248, %s249
      %p253 = pneg %p247
      %p254 = scmp.eq.s32.totalorder %s28, 1
      %p255 = por %p253, %p254
      %p256 = scmp.ne.s32.totalorder %s248, %s251
      %p257 = scmp.eq.s32.totalorder %s28, 0
      %p258 = por %p256, %p257
      %p259 = scmp.ne.s32.totalorder %s248, %s251
      %p260 = scmp.eq.s32.totalorder %s33, 1
      %p261 = por %p259, %p260
      %p262 = scmp.ne.s32.totalorder %s251, %s252
      %p263 = scmp.eq.s32.totalorder %s33, 0
      %p264 = por %p262, %p263
      %p265 = scmp.ne.s32.totalorder %s251, %s252
      %p266 = scmp.eq.s32.totalorder %s34, 1
      %p267 = por %p265, %p266
      %p269 = scmp.ne.s32.totalorder %s252, %s268
      %p270 = scmp.eq.s32.totalorder %s34, 0
      %p271 = por %p269, %p270
      %s272 = ssub.s32 %s35, %s47
      %p273 = scmp.eq.s32.totalorder %s272, 0
      %s275 = sadd.s32 %s274, 1
      %s276 = scalar_select %p273, %s274, %s275
      %p279 = pneg %p273
      %p280 = scmp.eq.s32.totalorder %s28, 1
      %p281 = por %p279, %p280
      %p282 = scmp.ne.s32.totalorder %s274, %s277
      %p283 = scmp.eq.s32.totalorder %s28, 0
      %p284 = por %p282, %p283
      %p285 = scmp.ne.s32.totalorder %s274, %s277
      %p286 = scmp.eq.s32.totalorder %s33, 1
      %p287 = por %p285, %p286
      %p288 = scmp.ne.s32.totalorder %s277, %s278
      %p289 = scmp.eq.s32.totalorder %s33, 0
      %p290 = por %p288, %p289
      %p291 = scmp.ne.s32.totalorder %s277, %s278
      %p292 = scmp.eq.s32.totalorder %s34, 1
      %p293 = por %p291, %p292
      %p295 = scmp.ne.s32.totalorder %s278, %s294
      %p296 = scmp.eq.s32.totalorder %s34, 0
      %p297 = por %p295, %p296
      %p298 = scmp.le.s32.totalorder 1, %s28
      %p299 = scmp.lt.s32.totalorder %s28, 3
      %p300 = pnand %p298, %p299
      %p301 = pneg %p300
      // Predicated region
      $region9: #{tpu_custom_call.1} parent=5 // pred_check
        _
      $region10: #{tpu_custom_call.1} parent=5 // pred_check_branch
        %303 = sbr.rel (%p300) target = $region12
      $region11: #{tpu_custom_call.1} parent=5 // pred_region
        %s304 = ssub.s32 %s28, 1
      $region12: #{tpu_custom_call.1} parent=5 // pred_fallthru
        _
      %p305 = scmp.lt.s32.totalorder %s28, 2
      // Predicated region
      $region13: #{tpu_custom_call.1} parent=5 // pred_check
        %p306 = pneg %p305
      $region14: #{tpu_custom_call.1} parent=5 // pred_check_branch
        %308 = sbr.rel (%p306) target = $region16
      $region15: #{tpu_custom_call.1} parent=5 // pred_region
        // Predicated region
        $region17: #{tpu_custom_call.1} parent=15 // pred_check
          %p309 = pneg %p66
        $region18: #{tpu_custom_call.1} parent=15 // pred_check_branch
          %311 = sbr.rel (%p309) target = $region20
        $region19: #{tpu_custom_call.1} parent=15 // pred_region
          %s312 = sand.u32 %s56, 1
          %s313 = scalar_lea.sflag [#allocation6], %s312
          %s314 = sand.u32 %s56, 1
          %s315 = smul.addr %s314, 8
          %s316 = scalar_lea.vmem [#allocation5], %s315
          %s317 = sadd.s32 %s35, %s36
          %p318 = scmp.lt.s32.totalorder %s317, 1
          %s319 = scalar_select %p318, %s317, 1
          %s321 = ssub.s32 128, 128
          %322 = vsyncadd %s313, %s321
          %s323 = smul.addr %s319, 128
          %s324 = scalar_lea.hbm %s0, %s323
          %s326 = sshll.u32 %s316, 4
          %s327 = int_to_ptr.vmem [resolvable:$true] %s326
          %329 = dma.hbm_to_vmem [thread:$0]  %s324, 128, %s327, %s313
        $region20: #{tpu_custom_call.1} parent=15 // pred_fallthru
          _
        // Predicated region
        $region21: #{tpu_custom_call.1} parent=15 // pred_check
          %p330 = pneg %p98
        $region22: #{tpu_custom_call.1} parent=15 // pred_check_branch
          %332 = sbr.rel (%p330) target = $region24
        $region23: #{tpu_custom_call.1} parent=15 // pred_region
          %s333 = sand.u32 %s28, 1
          %s334 = scalar_lea.sflag [#allocation9], %s333
          %s335 = sand.u32 %s88, 1
          %s336 = smul.addr %s335, 8
          %s337 = scalar_lea.vmem [#allocation8], %s336
          %s338 = sadd.s32 %s35, %s36
          %p339 = scmp.lt.s32.totalorder %s338, 1
          %s340 = scalar_select %p339, %s338, 1
          %s342 = ssub.s32 128, 128
          %343 = vsyncadd %s334, %s342
          %s344 = smul.addr %s340, 128
          %s345 = scalar_lea.hbm %s1, %s344
          %s347 = sshll.u32 %s337, 4
          %s348 = int_to_ptr.vmem [resolvable:$true] %s347
          %350 = dma.hbm_to_vmem [thread:$0]  %s345, 128, %s348, %s334
        $region24: #{tpu_custom_call.1} parent=15 // pred_fallthru
          _
        // Predicated region
        $region25: #{tpu_custom_call.1} parent=15 // pred_check
          %p351 = pneg %p130
        $region26: #{tpu_custom_call.1} parent=15 // pred_check_branch
          %353 = sbr.rel (%p351) target = $region28
        $region27: #{tpu_custom_call.1} parent=15 // pred_region
          %s354 = sand.u32 %s28, 1
          %s355 = scalar_lea.sflag [#allocation9], %s354
          %s356 = sand.u32 %s120, 1
          %s357 = smul.addr %s356, 8
          %s358 = scalar_lea.vmem [#allocation10], %s357
          %s359 = sadd.s32 %s35, %s36
          %p360 = scmp.lt.s32.totalorder %s359, 0
          %s361 = scalar_select %p360, %s359, 0
          %s363 = ssub.s32 128, 128
          %364 = vsyncadd %s355, %s363
          %s365 = smul.addr %s361, 128
          %s366 = scalar_lea.hbm %s2, %s365
          %s368 = sshll.u32 %s358, 4
          %s369 = int_to_ptr.vmem [resolvable:$true] %s368
          %371 = dma.hbm_to_vmem [thread:$0]  %s366, 128, %s369, %s355
        $region28: #{tpu_custom_call.1} parent=15 // pred_fallthru
          _
        // Predicated region
        $region29: #{tpu_custom_call.1} parent=15 // pred_check
          %p372 = pneg %p162
        $region30: #{tpu_custom_call.1} parent=15 // pred_check_branch
          %374 = sbr.rel (%p372) target = $region32
        $region31: #{tpu_custom_call.1} parent=15 // pred_region
          %s375 = sand.u32 %s28, 1
          %s376 = scalar_lea.sflag [#allocation12], %s375
          %s377 = sand.u32 %s152, 1
          %s378 = smul.addr %s377, 8
          %s379 = scalar_lea.vmem [#allocation11], %s378
          %s380 = sadd.s32 %s35, %s36
          %p381 = scmp.lt.s32.totalorder %s380, 0
          %s382 = scalar_select %p381, %s380, 0
          %s384 = ssub.s32 128, 128
          %385 = vsyncadd %s376, %s384
          %s386 = smul.addr %s382, 128
          %s387 = scalar_lea.hbm %s3, %s386
          %s389 = sshll.u32 %s379, 4
          %s390 = int_to_ptr.vmem [resolvable:$true] %s389
          %392 = dma.hbm_to_vmem [thread:$0]  %s387, 128, %s390, %s376
        $region32: #{tpu_custom_call.1} parent=15 // pred_fallthru
          _
        // Predicated region
        $region33: #{tpu_custom_call.1} parent=15 // pred_check
          %p393 = pneg %p194
        $region34: #{tpu_custom_call.1} parent=15 // pred_check_branch
          %395 = sbr.rel (%p393) target = $region36
        $region35: #{tpu_custom_call.1} parent=15 // pred_region
          %s396 = sand.u32 %s28, 1
          %s397 = scalar_lea.sflag [#allocation12], %s396
          %s398 = sand.u32 %s184, 1
          %s399 = smul.addr %s398, 8
          %s400 = scalar_lea.vmem [#allocation13], %s399
          %s401 = sadd.s32 %s35, %s36
          %p402 = scmp.lt.s32.totalorder %s401, 0
          %s403 = scalar_select %p402, %s401, 0
          %s405 = ssub.s32 128, 128
          %406 = vsyncadd %s397, %s405
          %s407 = smul.addr %s403, 128
          %s408 = scalar_lea.hbm %s4, %s407
          %s410 = sshll.u32 %s400, 4
          %s411 = int_to_ptr.vmem [resolvable:$true] %s410
          %413 = dma.hbm_to_vmem [thread:$0]  %s408, 128, %s411, %s397
        $region36: #{tpu_custom_call.1} parent=15 // pred_fallthru
          _
        // Predicated region
        $region37: #{tpu_custom_call.1} parent=15 // pred_check
          %p414 = pneg %p226
        $region38: #{tpu_custom_call.1} parent=15 // pred_check_branch
          %416 = sbr.rel (%p414) target = $region40
        $region39: #{tpu_custom_call.1} parent=15 // pred_region
          %s417 = sadd.s32 %s35, %s36
          %p418 = scmp.lt.s32.totalorder %s417, 0
          %s419 = scalar_select %p418, %s417, 0
          %p420 = scmp.lt.s32.totalorder %s419, 0
          %s421 = scalar_select %p420, %s419, 0
          %s422 = smul.addr %s421, 8
          %s423 = scalar_lea.vmem %s5, %s422
          %s424 = sadd.s32 %s35, %s36
          %p425 = scmp.lt.s32.totalorder %s424, 0
          %s426 = scalar_select %p425, %s424, 0
        $region40: #{tpu_custom_call.1} parent=15 // pred_fallthru
          _
        // Predicated region
        $region41: #{tpu_custom_call.1} parent=15 // pred_check
          %p427 = pneg %p258
        $region42: #{tpu_custom_call.1} parent=15 // pred_check_branch
          %429 = sbr.rel (%p427) target = $region44
        $region43: #{tpu_custom_call.1} parent=15 // pred_region
          %s430 = sand.u32 %s248, 1
          %s431 = scalar_lea.sflag [#allocation15], %s430
          %s432 = sand.u32 %s248, 1
          %s433 = smul.addr %s432, 8
          %s434 = scalar_lea.vmem [#allocation14], %s433
          %s435 = sadd.s32 %s35, %s36
          %p436 = scmp.lt.s32.totalorder %s435, 0
          %s437 = scalar_select %p436, %s435, 0
          %s439 = ssub.s32 128, 128
          %440 = vsyncadd %s431, %s439
          %s441 = smul.addr %s437, 128
          %s442 = scalar_lea.hbm %s6, %s441
          %s444 = sshll.u32 %s434, 4
          %s445 = int_to_ptr.vmem [resolvable:$true] %s444
          %447 = dma.hbm_to_vmem [thread:$0]  %s442, 128, %s445, %s431
        $region44: #{tpu_custom_call.1} parent=15 // pred_fallthru
          _
      $region16: #{tpu_custom_call.1} parent=5 // pred_fallthru
        _
      %p448 = scmp.le.s32.totalorder 1, %s28
      %p449 = scmp.lt.s32.totalorder %s28, 3
      %p450 = pnand %p448, %p449
      %p451 = pneg %p450
      // Predicated region
      $region45: #{tpu_custom_call.1} parent=5 // pred_check
        _
      $region46: #{tpu_custom_call.1} parent=5 // pred_check_branch
        %453 = sbr.rel (%p450) target = $region48
      $region47: #{tpu_custom_call.1} parent=5 // pred_region
        %s454 = ssub.s32 %s28, 1
        %s455 = sand.u32 %s59, 1
        %s456 = scalar_lea.sflag [#allocation6], %s455
        %s457 = sand.u32 %s59, 1
        %s458 = smul.addr %s457, 8
        %s459 = scalar_lea.vmem [#allocation5], %s458
        // Predicated region
        $region49: #{tpu_custom_call.1} parent=47 // pred_check
          %p460 = pneg %p72
        $region50: #{tpu_custom_call.1} parent=47 // pred_check_branch
          %462 = sbr.rel (%p460) target = $region52
        $region51: #{tpu_custom_call.1} parent=47 // pred_region
          %463 = dma.done %s456, 128
        $region52: #{tpu_custom_call.1} parent=47 // pred_fallthru
          _
        %s464 = sand.u32 %s33, 1
        %s465 = scalar_lea.sflag [#allocation9], %s464
        %s466 = sand.u32 %s91, 1
        %s467 = smul.addr %s466, 8
        %s468 = scalar_lea.vmem [#allocation8], %s467
        // Predicated region
        $region53: #{tpu_custom_call.1} parent=47 // pred_check
          %p469 = pneg %p104
        $region54: #{tpu_custom_call.1} parent=47 // pred_check_branch
          %471 = sbr.rel (%p469) target = $region56
        $region55: #{tpu_custom_call.1} parent=47 // pred_region
          %472 = dma.done %s465, 128
        $region56: #{tpu_custom_call.1} parent=47 // pred_fallthru
          _
        %s473 = sand.u32 %s33, 1
        %s474 = scalar_lea.sflag [#allocation9], %s473
        %s475 = sand.u32 %s123, 1
        %s476 = smul.addr %s475, 8
        %s477 = scalar_lea.vmem [#allocation10], %s476
        // Predicated region
        $region57: #{tpu_custom_call.1} parent=47 // pred_check
          %p478 = pneg %p136
        $region58: #{tpu_custom_call.1} parent=47 // pred_check_branch
          %480 = sbr.rel (%p478) target = $region60
        $region59: #{tpu_custom_call.1} parent=47 // pred_region
          %481 = dma.done %s474, 128
        $region60: #{tpu_custom_call.1} parent=47 // pred_fallthru
          _
        %s482 = sand.u32 %s33, 1
        %s483 = scalar_lea.sflag [#allocation12], %s482
        %s484 = sand.u32 %s155, 1
        %s485 = smul.addr %s484, 8
        %s486 = scalar_lea.vmem [#allocation11], %s485
        // Predicated region
        $region61: #{tpu_custom_call.1} parent=47 // pred_check
          %p487 = pneg %p168
        $region62: #{tpu_custom_call.1} parent=47 // pred_check_branch
          %489 = sbr.rel (%p487) target = $region64
        $region63: #{tpu_custom_call.1} parent=47 // pred_region
          %490 = dma.done %s483, 128
        $region64: #{tpu_custom_call.1} parent=47 // pred_fallthru
          _
        %s491 = sand.u32 %s33, 1
        %s492 = scalar_lea.sflag [#allocation12], %s491
        %s493 = sand.u32 %s187, 1
        %s494 = smul.addr %s493, 8
        %s495 = scalar_lea.vmem [#allocation13], %s494
        // Predicated region
        $region65: #{tpu_custom_call.1} parent=47 // pred_check
          %p496 = pneg %p200
        $region66: #{tpu_custom_call.1} parent=47 // pred_check_branch
          %498 = sbr.rel (%p496) target = $region68
        $region67: #{tpu_custom_call.1} parent=47 // pred_region
          %499 = dma.done %s492, 128
        $region68: #{tpu_custom_call.1} parent=47 // pred_fallthru
          _
        %s500 = sand.u32 %s251, 1
        %s501 = scalar_lea.sflag [#allocation15], %s500
        %s502 = sand.u32 %s251, 1
        %s503 = smul.addr %s502, 8
        %s504 = scalar_lea.vmem [#allocation14], %s503
        // Predicated region
        $region69: #{tpu_custom_call.1} parent=47 // pred_check
          %p505 = pneg %p264
        $region70: #{tpu_custom_call.1} parent=47 // pred_check_branch
          %507 = sbr.rel (%p505) target = $region72
        $region71: #{tpu_custom_call.1} parent=47 // pred_region
          %508 = dma.done %s501, 128
        $region72: #{tpu_custom_call.1} parent=47 // pred_fallthru
          _
        %s509 = sand.u32 %s59, 1
        %s510 = scalar_lea.sflag [#allocation6], %s509
        %s511 = sand.u32 %s59, 1
        %s512 = smul.addr %s511, 8
        %s513 = scalar_lea.vmem [#allocation5], %s512
        %p514 = pneg %p72
        %p515 = pneg %p69
        %s516 = sand.u32 %s33, 1
        %s517 = scalar_lea.sflag [#allocation9], %s516
        %s518 = sand.u32 %s91, 1
        %s519 = smul.addr %s518, 8
        %s520 = scalar_lea.vmem [#allocation8], %s519
        %p521 = pneg %p104
        %p522 = pneg %p101
        %s523 = sand.u32 %s33, 1
        %s524 = scalar_lea.sflag [#allocation9], %s523
        %s525 = sand.u32 %s123, 1
        %s526 = smul.addr %s525, 8
        %s527 = scalar_lea.vmem [#allocation10], %s526
        %p528 = pneg %p136
        %p529 = pneg %p133
        %s530 = sand.u32 %s33, 1
        %s531 = scalar_lea.sflag [#allocation12], %s530
        %s532 = sand.u32 %s155, 1
        %s533 = smul.addr %s532, 8
        %s534 = scalar_lea.vmem [#allocation11], %s533
        %p535 = pneg %p168
        %p536 = pneg %p165
        %s537 = sand.u32 %s33, 1
        %s538 = scalar_lea.sflag [#allocation12], %s537
        %s539 = sand.u32 %s187, 1
        %s540 = smul.addr %s539, 8
        %s541 = scalar_lea.vmem [#allocation13], %s540
        %p542 = pneg %p200
        %p543 = pneg %p197
        %s544 = sadd.s32 %s37, %s38
        %p545 = scmp.lt.s32.totalorder %s544, 0
        %s546 = scalar_select %p545, %s544, 0
        %p547 = scmp.lt.s32.totalorder %s546, 0
        %s548 = scalar_select %p547, %s546, 0
        %s549 = smul.addr %s548, 8
        %s550 = scalar_lea.vmem %s5, %s549
        %p551 = pneg %p232
        %p552 = pneg %p229
        %s553 = sand.u32 %s251, 1
        %s554 = scalar_lea.sflag [#allocation15], %s553
        %s555 = sand.u32 %s251, 1
        %s556 = smul.addr %s555, 8
        %s557 = scalar_lea.vmem [#allocation14], %s556
        %p558 = pneg %p264
        %p559 = pneg %p261
        %p560 = pneg %p290
        %p561 = pneg %p287
        %s562 = sand.u32 %s277, 1
        %s563 = scalar_lea.sflag [#allocation7], %s562
        %s564 = sand.u32 %s277, 1
        %s565 = smul.addr %s564, 8
        %s566 = scalar_lea.vmem [#allocation16], %s565
        %s567 = sadd.s32 %s37, %s38
        %p568 = scmp.lt.s32.totalorder %s567, 1
        %s569 = scalar_select %p568, %s567, 1
        %s570 = sadd.s32 %s37, %s38
        %p571 = scmp.lt.s32.totalorder %s570, 1
        %s572 = scalar_select %p571, %s570, 1
        %s573 = sadd.s32 %s37, %s38
        %p574 = scmp.lt.s32.totalorder %s573, 0
        %s575 = scalar_select %p574, %s573, 0
        %s576 = sadd.s32 %s37, %s38
        %p577 = scmp.lt.s32.totalorder %s576, 0
        %s578 = scalar_select %p577, %s576, 0
        %s579 = sadd.s32 %s37, %s38
        %p580 = scmp.lt.s32.totalorder %s579, 0
        %s581 = scalar_select %p580, %s579, 0
        %s582 = sadd.s32 %s37, %s38
        %p583 = scmp.lt.s32.totalorder %s582, 0
        %s584 = scalar_select %p583, %s582, 0
        %p585 = scmp.lt.s32.totalorder %s584, 0
        %s586 = scalar_select %p585, %s584, 0
        %s587 = smul.addr %s586, 8
        %s588 = scalar_lea.vmem %s5, %s587
        %s589 = sadd.s32 %s37, %s38
        %p590 = scmp.lt.s32.totalorder %s589, 0
        %s591 = scalar_select %p590, %s589, 0
        %s592 = sadd.s32 %s37, %s38
        %p593 = scmp.lt.s32.totalorder %s592, 0
        %s594 = scalar_select %p593, %s592, 0
        %s595 = sadd.s32 %s37, %s38
        %p596 = scmp.eq.s32.totalorder %s38, 0
        // Predicated region
        $region73: #{tpu_custom_call.1} parent=47 // pred_check
          %p597 = pneg %p596
        $region74: #{tpu_custom_call.1} parent=47 // pred_check_branch
          %599 = sbr.rel (%p597) target = $region76
        $region75: #{tpu_custom_call.1} parent=47 // pred_region
          %600 = vst [vmem:[#allocation2] sm:$0xff] 0.0
          %601 = vst [vmem:[#allocation3] sm:$0xff] 0.0
          %602 = vst [vmem:[#allocation4] sm:$0xff] 0.0
        $region76: #{tpu_custom_call.1} parent=47 // pred_fallthru
          _
        %p603 = scmp.lt.s32.totalorder %s595, 2
        // Predicated region
        $region77: #{tpu_custom_call.1} parent=47 // pred_check
          %p604 = pneg %p603
        $region78: #{tpu_custom_call.1} parent=47 // pred_check_branch
          %606 = sbr.rel (%p604) target = $region80
        $region79: #{tpu_custom_call.1} parent=47 // pred_region
          %v607 = vld [vmem:[%s459] sm:$0xff]
          %v608 = vld [vmem:[%s468] sm:$0xff]
          %v609 = vsub.f32 %v607, %v608
          %v610 = vld [vmem:[#allocation2] sm:$0xff]
          %v611 = vmul.f32 %v609, %v609
          %v612 = vadd.f32 %v611, 0.0
          %v613 = vadd.f32 %v610, %v612
          %614 = vst [vmem:[#allocation2] sm:$0xff] %v613
        $region80: #{tpu_custom_call.1} parent=47 // pred_fallthru
          _
        %p615 = scmp.lt.s32.totalorder %s595, 1
        // Predicated region
        $region81: #{tpu_custom_call.1} parent=47 // pred_check
          %p616 = pneg %p615
        $region82: #{tpu_custom_call.1} parent=47 // pred_check_branch
          %618 = sbr.rel (%p616) target = $region84
        $region83: #{tpu_custom_call.1} parent=47 // pred_region
          %v619 = vld [vmem:[#allocation3] sm:$0xff]
          %v620 = vld [vmem:[%s477] sm:$0xff]
          %v621 = vand.u32 2147483647, %v620
          %v622 = vadd.f32 %v621, 0.0
          %v623 = vadd.f32 %v619, %v622
          %624 = vst [vmem:[#allocation3] sm:$0xff] %v623
          %v625 = vld [vmem:[#allocation4] sm:$0xff]
          %v626 = vld [vmem:[%s486] sm:$0xff]
          %v627 = vand.u32 2147483647, %v626
          %v628 = vadd.f32 %v627, 0.0
          %v629 = vadd.f32 %v625, %v628
          %630 = vst [vmem:[#allocation4] sm:$0xff] %v629
          %v631 = vld [vmem:[#allocation4] sm:$0xff]
          %v632 = vld [vmem:[%s495] sm:$0xff]
          %v633 = vand.u32 2147483647, %v632
          %v634 = vadd.f32 %v633, 0.0
          %v635 = vadd.f32 %v631, %v634
          %636 = vst [vmem:[#allocation4] sm:$0xff] %v635
          %v637 = vld [vmem:[#allocation4] sm:$0xff]
          %v638 = vld [vmem:[%s588] sm:$0xff]
          %v639 = vand.u32 2147483647, %v638
          %v640 = vadd.f32 %v639, 0.0
          %v641 = vadd.f32 %v637, %v640
          %642 = vst [vmem:[#allocation4] sm:$0xff] %v641
          %v643 = vld [vmem:[#allocation4] sm:$0xff]
          %v644 = vld [vmem:[%s504] sm:$0xff]
          %v645 = vand.u32 2147483647, %v644
          %v646 = vadd.f32 %v645, 0.0
          %v647 = vadd.f32 %v643, %v646
          %648 = vst [vmem:[#allocation4] sm:$0xff] %v647
        $region84: #{tpu_custom_call.1} parent=47 // pred_fallthru
          _
        // Predicated region
        $region85: #{tpu_custom_call.1} parent=47 // pred_check
          %p649 = pneg %p596
        $region86: #{tpu_custom_call.1} parent=47 // pred_check_branch
          %651 = sbr.rel (%p649) target = $region88
        $region87: #{tpu_custom_call.1} parent=47 // pred_region
          %v652 = vld [vmem:[#allocation2] sm:$0xff]
          %653 = vadd.xlane.f32.xlu0 %v652
          %v654 = vpop.xlane.xlu0 %653
          %v655 = vrot.slane %v654, 4
          %v656 = vadd.f32 %v654, %v655
          %v657 = vrot.slane %v656, 2
          %v658 = vadd.f32 %v656, %v657
          %v659 = vrot.slane %v658, 1
          %v660 = vadd.f32 %v658, %v659
          %s661 = vtos %v660
          %s662 = smul.f32 %s661, 0.00048828125
          %v663 = vld [vmem:[#allocation3] sm:$0xff]
          %664 = vadd.xlane.f32.xlu0 %v663
          %v665 = vpop.xlane.xlu0 %664
          %v666 = vrot.slane %v665, 4
          %v667 = vadd.f32 %v665, %v666
          %v668 = vrot.slane %v667, 2
          %v669 = vadd.f32 %v667, %v668
          %v670 = vrot.slane %v669, 1
          %v671 = vadd.f32 %v669, %v670
          %s672 = vtos %v671
          %s673 = smul.f32 %s672, 0.0001
          %s674 = sadd.f32 %s662, %s673
          %v675 = vld [vmem:[#allocation4] sm:$0xff]
          %676 = vadd.xlane.f32.xlu0 %v675
          %v677 = vpop.xlane.xlu0 %676
          %v678 = vrot.slane %v677, 4
          %v679 = vadd.f32 %v677, %v678
          %v680 = vrot.slane %v679, 2
          %v681 = vadd.f32 %v679, %v680
          %v682 = vrot.slane %v681, 1
          %v683 = vadd.f32 %v681, %v682
          %s684 = vtos %v683
          %s685 = sadd.f32 %s674, %s684
          %v686 = vstv %s685
          %687 = vst [vmem:[%s566] sm:$0xff] %v686
        $region88: #{tpu_custom_call.1} parent=47 // pred_fallthru
          _
        %s688 = sand.u32 %s277, 1
        %s689 = scalar_lea.sflag [#allocation7], %s688
        %s690 = sand.u32 %s277, 1
        %s691 = smul.addr %s690, 8
        %s692 = scalar_lea.vmem [#allocation16], %s691
        // Predicated region
        $region89: #{tpu_custom_call.1} parent=47 // pred_check
          %p693 = pneg %p287
        $region90: #{tpu_custom_call.1} parent=47 // pred_check_branch
          %695 = sbr.rel (%p693) target = $region92
        $region91: #{tpu_custom_call.1} parent=47 // pred_region
          %s697 = ssub.s32 128, 128
          %698 = vsyncadd %s689, %s697
          %s699 = smul.addr %s37, 128
          %s700 = scalar_lea.hbm %s7, %s699
          %s702 = sshll.u32 %s692, 4
          %s703 = int_to_ptr.vmem [resolvable:$true] %s702
          %705 = dma.vmem_to_hbm [thread:$0]  %s703, 128, %s700, %s689
        $region92: #{tpu_custom_call.1} parent=47 // pred_fallthru
          _
      $region48: #{tpu_custom_call.1} parent=5 // pred_fallthru
        _
      %p706 = scmp.le.s32.totalorder 2, %s28
      // Predicated region
      $region93: #{tpu_custom_call.1} parent=5 // pred_check
        %p707 = pneg %p706
      $region94: #{tpu_custom_call.1} parent=5 // pred_check_branch
        %709 = sbr.rel (%p707) target = $region96
      $region95: #{tpu_custom_call.1} parent=5 // pred_region
        %s710 = ssub.s32 %s28, 2
        // Predicated region
        $region97: #{tpu_custom_call.1} parent=95 // pred_check
          %p711 = pneg %p293
        $region98: #{tpu_custom_call.1} parent=95 // pred_check_branch
          %713 = sbr.rel (%p711) target = $region100
        $region99: #{tpu_custom_call.1} parent=95 // pred_region
          %s714 = sand.u32 %s278, 1
          %s715 = scalar_lea.sflag [#allocation7], %s714
          %s716 = sand.u32 %s278, 1
          %s717 = smul.addr %s716, 8
          %s718 = scalar_lea.vmem [#allocation16], %s717
          %719 = dma.done %s715, 128
        $region100: #{tpu_custom_call.1} parent=95 // pred_fallthru
          _
      $region96: #{tpu_custom_call.1} parent=5 // pred_fallthru
        _
    $region6: #{tpu_custom_call.1} parent=1 // loop_footer
      %s32 = sadd.s32 1, %s28
    $region7: #{tpu_custom_call.1} parent=1 // loop_footer_branch
      %27 = sbr.rel target = $region3
    $region8: #{tpu_custom_call.1} parent=1 // loop_exit
      _
    %720 = vsyncpa [#allocation6], 1
    %s721 = scalar_lea.sflag [#allocation6], 1
    %722 = vsyncpa %s721, 1
    %723 = vsyncpa [#allocation9], 1
    %s724 = scalar_lea.sflag [#allocation9], 1
    %725 = vsyncpa %s724, 1
    %726 = vsyncpa [#allocation12], 1
    %s727 = scalar_lea.sflag [#allocation12], 1
    %728 = vsyncpa %s727, 1
    %729 = vsyncpa [#allocation15], 1
    %s730 = scalar_lea.sflag [#allocation15], 1
    %731 = vsyncpa %s730, 1
    %732 = vsyncpa [#allocation7], 1
    %s733 = scalar_lea.sflag [#allocation7], 1
    %734 = vsyncpa %s733, 1

</llo_original>
